<compile_context>
chip_gen: v5e
topology: v5e:2x2
jax: 0.10.0
libtpu: 0.0.40
codegen_flags: <defaults>
</compile_context>

<pallas_src>
import functools

import jax
import jax.numpy as jnp
from jax.experimental import pallas as pl
from jax.experimental.pallas import tpu as pltpu

NEG_SLOPE = 0.01   # nn.LeakyReLU() default
LANE = 128         # TPU lane width


def _leaky(v):
    return jnp.where(v > 0, v, NEG_SLOPE * v)


def _round_up(n, m):
    return ((n + m - 1) // m) * m


# ----------------------------------------------------------------------------- kernel
def _internal_encoder_kernel(*refs, has_right, has_left, feature_size, compute_dtype):
    """refs (inputs..., out_ref), order set by the wrapper:
         x, [right], [left], A1, [R1], [L1], b1, W2, [W2L], WF, out
       x : (TM, I)      right/left : (TM, F)        (streamed, unpadded)
       A1: (I, 128)  R1/L1: (F, 128)  b1: (1, 128)  W2/W2L/WF: (128, 128)  (VMEM-resident)
       out: (TM, 128)   real feature columns = [:F], rest exactly zero."""
    f32 = jnp.float32
    it = iter(refs)
    x_ref = next(it)
    r_ref = next(it) if has_right else None
    l_ref = next(it) if has_left else None
    a1_ref = next(it)
    r1_ref = next(it) if has_right else None
    l1_ref = next(it) if has_left else None
    b1_ref = next(it)
    w2_ref = next(it)
    w2l_ref = next(it) if has_left else None
    wf_ref = next(it)
    out_ref = next(it)

    # ---- stage 1: the three first-layer Linears fused along the 128-lane output axis.
    # h cols [0:H)=attr, [H:2H)=right, [2H:3H)=left, col 127 = 1 (constant lane for bias
    # folding downstream).  Biases live in the single b1 row (one VPU add + one LeakyReLU).
    h = jnp.dot(x_ref[...].astype(compute_dtype), a1_ref[...],
                preferred_element_type=f32)
    if has_right:
        h = h + jnp.dot(r_ref[...].astype(compute_dtype), r1_ref[...],
                        preferred_element_type=f32)
    if has_left:
        h = h + jnp.dot(l_ref[...].astype(compute_dtype), l1_ref[...],
                        preferred_element_type=f32)
    h = _leaky(h + b1_ref[...]).astype(compute_dtype)          # (TM, 128)

    # ---- stage 2: attr + right second-layer Linears fused (block-diagonal weight,
    # biases folded via the constant-1 lane); LeakyReLU on the whole slab.
    # s cols [0:F)=attributes, [F:2F)=context(right part), col 127 = 1.
    s = _leaky(jnp.dot(h, w2_ref[...], preferred_element_type=f32))

    if has_left:
        # left second-layer Linear (pre-activation, bias folded), only ctx lanes nonzero.
        lc = jnp.dot(h, w2l_ref[...], preferred_element_type=f32)
        lane = jax.lax.broadcasted_iota(jnp.int32, s.shape, 1)
        ctx = (lane >= feature_size) & (lane < 2 * feature_size)
        # reference: context = LeakyReLU(LeakyReLU(right_stage2) + left_stage2)
        s = jnp.where(ctx, _leaky(s + lc), s)
    s = s.astype(compute_dtype)

    # ---- final: cat(attributes, context) @ final_w^T + final_b (folded) -> LeakyReLU
    feat = _leaky(jnp.dot(s, wf_ref[...], preferred_element_type=f32))
    out_ref[...] = feat.astype(out_ref.dtype)


# ------------------------------------------------------------------------- param setup
def make_internal_encoder_params(key, input_size, feature_size, hidden_size):
    """Deterministic PyTorch-Linear-style init: U(-1/sqrt(fan_in), 1/sqrt(fan_in))."""
    names_shapes = [
        ("attr_w1", (hidden_size, input_size)),   ("attr_b1", (hidden_size,)),
        ("attr_w2", (feature_size, hidden_size)), ("attr_b2", (feature_size,)),
        ("right_w1", (hidden_size, feature_size)), ("right_b1", (hidden_size,)),
        ("right_w2", (feature_size, hidden_size)), ("right_b2", (feature_size,)),
        ("left_w1", (hidden_size, feature_size)),  ("left_b1", (hidden_size,)),
        ("left_w2", (feature_size, hidden_size)),  ("left_b2", (feature_size,)),
        ("final_w", (feature_size, 2 * feature_size)), ("final_b", (feature_size,)),
    ]
    params = {}
    keys = jax.random.split(key, len(names_shapes))
    for k, (name, shape) in zip(keys, names_shapes):
        fan_in = shape[-1] if len(shape) == 2 else shape[0]
        bound = 1.0 / jnp.sqrt(jnp.float32(fan_in))
        params[name] = jax.random.uniform(k, shape, jnp.float32, -bound, bound)
    return params


def prepare_kernel_params(params, input_size, feature_size, hidden_size,
                          compute_dtype=jnp.bfloat16):
    """One-time packing into fused, lane-dense kernel weights.

    Lane layouts:
      h (stage-1 out):  [0:H)=attr  [H:2H)=right  [2H:3H)=left   lane 127 = 1
      s (stage-2 out):  [0:F)=attributes  [F:2F)=context         lane 127 = 1
      output:           [0:F)=feature, rest zero
    Biases of stage-2 / final are folded into weight row 127 (multiplied by the constant-1
    lane); stage-1 biases live in the single b1 row (kept f32, added to the f32 acc)."""
    I, F, H = input_size, feature_size, hidden_size
    assert I <= LANE and 3 * H <= LANE - 1 and 2 * F <= LANE - 1, "sizes exceed lane budget"
    f32 = jnp.float32

    def block(rows, pieces):
        w = jnp.zeros((rows, LANE), f32)
        for r0, c0, val in pieces:
            val = jnp.asarray(val, f32)
            w = w.at[r0:r0 + val.shape[0], c0:c0 + val.shape[1]].set(val)
        return w.astype(compute_dtype)

    a1T, r1T, l1T = params["attr_w1"].T, params["right_w1"].T, params["left_w1"].T
    a2T, r2T, l2T = params["attr_w2"].T, params["right_w2"].T, params["left_w2"].T
    fT = params["final_w"].T                                    # (2F, F)
    one = jnp.ones((1, 1), f32)

    A1 = block(I, [(0, 0, a1T)])                                # (I, 128)
    R1 = block(F, [(0, H, r1T)])                                # (F, 128)
    L1 = block(F, [(0, 2 * H, l1T)])                            # (F, 128)

    b1 = jnp.zeros((1, LANE), f32)                              # stage-1 bias row (f32)
    b1 = b1.at[0, 0:H].set(params["attr_b1"])
    b1 = b1.at[0, H:2 * H].set(params["right_b1"])
    b1 = b1.at[0, 2 * H:3 * H].set(params["left_b1"])
    b1 = b1.at[0, LANE - 1].set(1.0)                            # constant-1 lane

    W2_a = block(LANE, [(0, 0, a2T),
                        (LANE - 1, 0, params["attr_b2"][None, :]),
                        (LANE - 1, LANE - 1, one)])
    W2_ar = block(LANE, [(0, 0, a2T), (H, F, r2T),
                         (LANE - 1, 0, params["attr_b2"][None, :]),
                         (LANE - 1, F, params["right_b2"][None, :]),
                         (LANE - 1, LANE - 1, one)])
    W2L = block(LANE, [(2 * H, F, l2T),
                       (LANE - 1, F, params["left_b2"][None, :])])
    WF = block(LANE, [(0, 0, fT[:F, :]), (F, 0, fT[F:, :]),
                      (LANE - 1, 0, params["final_b"][None, :])])

    return dict(A1=A1, R1=R1, L1=L1, b1=b1, W2_a=W2_a, W2_ar=W2_ar, W2L=W2L, WF=WF,
                feature_size=F, compute_dtype=compute_dtype)


# ----------------------------------------------------------------------------- wrapper
def internal_encoder_forward(kparams, x, right_input=None, left_input=None):
    """x: (M, input_size) stacked node rows.  right_input / left_input: (M, feature_size)
    or None (static branch, like the PyTorch ifs).  Returns (M, feature_size)."""
    has_right = right_input is not None
    # NOTE: matches the PyTorch module — left_input without right_input is ignored.
    has_left = has_right and (left_input is not None)

    F = kparams["feature_size"]
    dt = kparams["compute_dtype"]
    M = x.shape[0]

    # Row tiling: one block for small M; otherwise >=2 parallel tiles (v7x megacore can
    # split the row axis) capped around 2048 rows; all tiles fit easily in 32 MiB VMEM.
    m8 = _round_up(max(M, 8), 8)
    if m8 <= 512:
        tm, grid = m8, 1
    else:
        n_tiles = max(2, pl.cdiv(m8, 2048))
        tm = _round_up(pl.cdiv(m8, n_tiles), 8)
        grid = pl.cdiv(m8, tm)
    m_pad = grid * tm

    def prep_rows(a):
        # Inputs are streamed UNPADDED in their native dtype (cast to compute dtype
        # happens inside the kernel) — no extra wrapper HBM pass.  Only pad rows if
        # M is not already a multiple of the tile.
        if a.shape[0] != m_pad:
            a = jnp.pad(a, ((0, m_pad - a.shape[0]), (0, 0)))
        return a

    ins, in_specs = [], []

    def add_stream(a):
        a = prep_rows(a)
        ins.append(a)
        in_specs.append(pl.BlockSpec((tm, a.shape[1]), lambda i: (i, 0)))

    def add_resident(a):
        ins.append(a)
        in_specs.append(pl.BlockSpec(a.shape, lambda i: (0, 0)))

    add_stream(x)
    if has_right:
        add_stream(right_input)
    if has_left:
        add_stream(left_input)

    add_resident(kparams["A1"])
    if has_right:
        add_resident(kparams["R1"])
    if has_left:
        add_resident(kparams["L1"])
    add_resident(kparams["b1"])
    add_resident(kparams["W2_ar"] if has_right else kparams["W2_a"])
    if has_left:
        add_resident(kparams["W2L"])
    add_resident(kparams["WF"])

    kernel = functools.partial(
        _internal_encoder_kernel,
        has_right=has_right, has_left=has_left,
        feature_size=F, compute_dtype=dt)

    out = pl.pallas_call(
        kernel,
        out_shape=jax.ShapeDtypeStruct((m_pad, LANE), dt),    # lane-dense output
        grid=(grid,),
        in_specs=in_specs,
        out_specs=pl.BlockSpec((tm, LANE), lambda i: (i, 0)),
        compiler_params=pltpu.CompilerParams(
            dimension_semantics=("parallel",)),
    )(*ins)

    return out[:M, :F]


# --------------------------------------------------------------------------- reference
def _reference_forward(params, x, right_input, left_input):
    """Pure-JAX reference mirroring the PyTorch module exactly (f32)."""
    def lin(v, w, b):
        return v @ w.T + b

    a = _leaky(lin(x, params["attr_w1"], params["attr_b1"]))
    a = _leaky(lin(a, params["attr_w2"], params["attr_b2"]))
    if right_input is not None:
        c = _leaky(lin(right_input, params["right_w1"], params["right_b1"]))
        c = _leaky(lin(c, params["right_w2"], params["right_b2"]))
        if left_input is not None:
            lft = _leaky(lin(left_input, params["left_w1"], params["left_b1"]))
            c = c + lin(lft, params["left_w2"], params["left_b2"])
            c = _leaky(c)
    else:
        c = jnp.zeros((x.shape[0], params["attr_w2"].shape[0]), jnp.float32)
    feat = lin(jnp.concatenate([a, c], axis=1), params["final_w"], params["final_b"])
    return _leaky(feat)


if __name__ == "__main__":
    INPUT_SIZE, FEATURE_SIZE, HIDDEN_SIZE = 16, 32, 32
    BATCH, N_NODES = 8, 4                       # 32 node-rows evaluated in one pallas_call
    M = BATCH * N_NODES

    key = jax.random.PRNGKey(0)
    kp, kx, kr, kl = jax.random.split(key, 4)

    params = make_internal_encoder_params(kp, INPUT_SIZE, FEATURE_SIZE, HIDDEN_SIZE)
    x = jax.random.normal(kx, (M, INPUT_SIZE), jnp.float32)
    right_in = jax.random.normal(kr, (M, FEATURE_SIZE), jnp.float32)
    left_in = jax.random.normal(kl, (M, FEATURE_SIZE), jnp.float32)

    # ---- exactness path: f32 weights / compute, all three static branch configs ----
    kp_f32 = prepare_kernel_params(params, INPUT_SIZE, FEATURE_SIZE, HIDDEN_SIZE,
                                   compute_dtype=jnp.float32)

    out = jax.block_until_ready(internal_encoder_forward(kp_f32, x, right_in, left_in))
    ref = _reference_forward(params, x, right_in, left_in)
    assert out.shape == (M, FEATURE_SIZE)
    assert jnp.allclose(out, ref, atol=1e-3, rtol=1e-3), "mismatch (f32, both children)"

    out_r = jax.block_until_ready(internal_encoder_forward(kp_f32, x, right_in, None))
    ref_r = _reference_forward(params, x, right_in, None)
    assert jnp.allclose(out_r, ref_r, atol=1e-3, rtol=1e-3), "mismatch (f32, right only)"

    out_n = jax.block_until_ready(internal_encoder_forward(kp_f32, x, None, None))
    ref_n = _reference_forward(params, x, None, None)
    assert jnp.allclose(out_n, ref_n, atol=1e-3, rtol=1e-3), "mismatch (f32, no children)"

    # ---- fast path: bf16 weights / activations, f32 MXU accumulation ----
    kp_bf16 = prepare_kernel_params(params, INPUT_SIZE, FEATURE_SIZE, HIDDEN_SIZE,
                                    compute_dtype=jnp.bfloat16)
    out_b = jax.block_until_ready(internal_encoder_forward(kp_bf16, x, right_in, left_in))
    assert out_b.shape == (M, FEATURE_SIZE)
    assert jnp.allclose(out_b.astype(jnp.float32), ref, atol=1e-1, rtol=1e-1), \
        "mismatch (bf16, both children)"

    print("KERNEL_OK")
</pallas_src>

<mosaic_0001>
module attributes {stable_mosaic.version = 11 : i64} {
  func.func @_internal_encoder_kernel(%arg0: i32, %arg1: memref<32x16xf32, #tpu.memory_space<vmem>>, %arg2: memref<32x32xf32, #tpu.memory_space<vmem>>, %arg3: memref<32x32xf32, #tpu.memory_space<vmem>>, %arg4: memref<16x128xf32, #tpu.memory_space<vmem>>, %arg5: memref<32x128xf32, #tpu.memory_space<vmem>>, %arg6: memref<32x128xf32, #tpu.memory_space<vmem>>, %arg7: memref<1x128xf32, #tpu.memory_space<vmem>>, %arg8: memref<128x128xf32, #tpu.memory_space<vmem>>, %arg9: memref<128x128xf32, #tpu.memory_space<vmem>>, %arg10: memref<128x128xf32, #tpu.memory_space<vmem>>, %arg11: memref<32x128xf32, #tpu.memory_space<vmem>>) attributes {dimension_semantics = [#tpu.dimension_semantics<parallel>], iteration_bounds = array<i64: 1>, scalar_prefetch = 0 : i64, scratch_operands = 0 : i64, tpu.core_type = #tpu.core_type<tc>, window_params = [{transform_indices = @transform_0, window_bounds = array<i64: 32, 16>}, {transform_indices = @transform_1, window_bounds = array<i64: 32, 32>}, {transform_indices = @transform_2, window_bounds = array<i64: 32, 32>}, {pipeline_mode = #tpu.pipeline_mode<synchronous>, transform_indices = @transform_3, window_bounds = array<i64: 16, 128>}, {pipeline_mode = #tpu.pipeline_mode<synchronous>, transform_indices = @transform_4, window_bounds = array<i64: 32, 128>}, {pipeline_mode = #tpu.pipeline_mode<synchronous>, transform_indices = @transform_5, window_bounds = array<i64: 32, 128>}, {pipeline_mode = #tpu.pipeline_mode<synchronous>, transform_indices = @transform_6, window_bounds = array<i64: 1, 128>}, {pipeline_mode = #tpu.pipeline_mode<synchronous>, transform_indices = @transform_7, window_bounds = array<i64: 128, 128>}, {pipeline_mode = #tpu.pipeline_mode<synchronous>, transform_indices = @transform_8, window_bounds = array<i64: 128, 128>}, {pipeline_mode = #tpu.pipeline_mode<synchronous>, transform_indices = @transform_9, window_bounds = array<i64: 128, 128>}, {transform_indices = @transform_10, window_bounds = array<i64: 32, 128>}]} {
    %c0 = arith.constant 0 : index
    %c0_0 = arith.constant 0 : index
    %0 = vector.load %arg1[%c0, %c0_0] : memref<32x16xf32, #tpu.memory_space<vmem>>, vector<32x16xf32>
    %c0_1 = arith.constant 0 : index
    %c0_2 = arith.constant 0 : index
    %1 = vector.load %arg4[%c0_1, %c0_2] : memref<16x128xf32, #tpu.memory_space<vmem>>, vector<16x128xf32>
    %cst = arith.constant dense<0.000000e+00> : vector<32x128xf32>
    %2 = tpu.matmul %0, %1, %cst {dimension_numbers = #tpu.dot_dimension_numbers<[1], [0], [0], [1], [0, 0, 1, 1], [], []>} : vector<32x16xf32>, vector<16x128xf32>, vector<32x128xf32> -> vector<32x128xf32>
    %c0_3 = arith.constant 0 : index
    %c0_4 = arith.constant 0 : index
    %3 = vector.load %arg2[%c0_3, %c0_4] : memref<32x32xf32, #tpu.memory_space<vmem>>, vector<32x32xf32>
    %c0_5 = arith.constant 0 : index
    %c0_6 = arith.constant 0 : index
    %4 = vector.load %arg5[%c0_5, %c0_6] : memref<32x128xf32, #tpu.memory_space<vmem>>, vector<32x128xf32>
    %cst_7 = arith.constant dense<0.000000e+00> : vector<32x128xf32>
    %5 = tpu.matmul %3, %4, %cst_7 {dimension_numbers = #tpu.dot_dimension_numbers<[1], [0], [0], [1], [0, 0, 1, 1], [], []>} : vector<32x32xf32>, vector<32x128xf32>, vector<32x128xf32> -> vector<32x128xf32>
    %6 = arith.addf %2, %5 : vector<32x128xf32>
    %c0_8 = arith.constant 0 : index
    %c0_9 = arith.constant 0 : index
    %7 = vector.load %arg3[%c0_8, %c0_9] : memref<32x32xf32, #tpu.memory_space<vmem>>, vector<32x32xf32>
    %c0_10 = arith.constant 0 : index
    %c0_11 = arith.constant 0 : index
    %8 = vector.load %arg6[%c0_10, %c0_11] : memref<32x128xf32, #tpu.memory_space<vmem>>, vector<32x128xf32>
    %cst_12 = arith.constant dense<0.000000e+00> : vector<32x128xf32>
    %9 = tpu.matmul %7, %8, %cst_12 {dimension_numbers = #tpu.dot_dimension_numbers<[1], [0], [0], [1], [0, 0, 1, 1], [], []>} : vector<32x32xf32>, vector<32x128xf32>, vector<32x128xf32> -> vector<32x128xf32>
    %10 = arith.addf %6, %9 : vector<32x128xf32>
    %c0_13 = arith.constant 0 : index
    %c0_14 = arith.constant 0 : index
    %11 = vector.load %arg7[%c0_13, %c0_14] : memref<1x128xf32, #tpu.memory_space<vmem>>, vector<1x128xf32>
    %12 = vector.broadcast %11 : vector<1x128xf32> to vector<32x128xf32>
    %13 = arith.addf %10, %12 : vector<32x128xf32>
    %cst_15 = arith.constant 0.000000e+00 : f32
    %14 = vector.broadcast %cst_15 : f32 to vector<32x128xf32>
    %15 = arith.cmpf ogt, %13, %14 : vector<32x128xf32>
    %cst_16 = arith.constant 0.00999999977 : f32
    %16 = vector.broadcast %cst_16 : f32 to vector<32x128xf32>
    %17 = arith.mulf %16, %13 : vector<32x128xf32>
    %18 = arith.select %15, %13, %17 : vector<32x128xi1>, vector<32x128xf32>
    %c0_17 = arith.constant 0 : index
    %c0_18 = arith.constant 0 : index
    %19 = vector.load %arg8[%c0_17, %c0_18] : memref<128x128xf32, #tpu.memory_space<vmem>>, vector<128x128xf32>
    %cst_19 = arith.constant dense<0.000000e+00> : vector<32x128xf32>
    %20 = tpu.matmul %18, %19, %cst_19 {dimension_numbers = #tpu.dot_dimension_numbers<[1], [0], [0], [1], [0, 0, 1, 1], [], []>} : vector<32x128xf32>, vector<128x128xf32>, vector<32x128xf32> -> vector<32x128xf32>
    %cst_20 = arith.constant 0.000000e+00 : f32
    %21 = vector.broadcast %cst_20 : f32 to vector<32x128xf32>
    %22 = arith.cmpf ogt, %20, %21 : vector<32x128xf32>
    %cst_21 = arith.constant 0.00999999977 : f32
    %23 = vector.broadcast %cst_21 : f32 to vector<32x128xf32>
    %24 = arith.mulf %23, %20 : vector<32x128xf32>
    %25 = arith.select %22, %20, %24 : vector<32x128xi1>, vector<32x128xf32>
    %c0_22 = arith.constant 0 : index
    %c0_23 = arith.constant 0 : index
    %26 = vector.load %arg9[%c0_22, %c0_23] : memref<128x128xf32, #tpu.memory_space<vmem>>, vector<128x128xf32>
    %cst_24 = arith.constant dense<0.000000e+00> : vector<32x128xf32>
    %27 = tpu.matmul %18, %26, %cst_24 {dimension_numbers = #tpu.dot_dimension_numbers<[1], [0], [0], [1], [0, 0, 1, 1], [], []>} : vector<32x128xf32>, vector<128x128xf32>, vector<32x128xf32> -> vector<32x128xf32>
    %28 = tpu.iota {dimensions = array<i32: 1>} : vector<32x128xi32>
    %c32_i32 = arith.constant 32 : i32
    %29 = vector.broadcast %c32_i32 : i32 to vector<32x128xi32>
    %30 = arith.cmpi sge, %28, %29 : vector<32x128xi32>
    %c64_i32 = arith.constant 64 : i32
    %31 = vector.broadcast %c64_i32 : i32 to vector<32x128xi32>
    %32 = arith.cmpi slt, %28, %31 : vector<32x128xi32>
    %33 = arith.andi %30, %32 : vector<32x128xi1>
    %34 = arith.addf %25, %27 : vector<32x128xf32>
    %cst_25 = arith.constant 0.000000e+00 : f32
    %35 = vector.broadcast %cst_25 : f32 to vector<32x128xf32>
    %36 = arith.cmpf ogt, %34, %35 : vector<32x128xf32>
    %cst_26 = arith.constant 0.00999999977 : f32
    %37 = vector.broadcast %cst_26 : f32 to vector<32x128xf32>
    %38 = arith.mulf %37, %34 : vector<32x128xf32>
    %39 = arith.select %36, %34, %38 : vector<32x128xi1>, vector<32x128xf32>
    %40 = arith.select %33, %39, %25 : vector<32x128xi1>, vector<32x128xf32>
    %c0_27 = arith.constant 0 : index
    %c0_28 = arith.constant 0 : index
    %41 = vector.load %arg10[%c0_27, %c0_28] : memref<128x128xf32, #tpu.memory_space<vmem>>, vector<128x128xf32>
    %cst_29 = arith.constant dense<0.000000e+00> : vector<32x128xf32>
    %42 = tpu.matmul %40, %41, %cst_29 {dimension_numbers = #tpu.dot_dimension_numbers<[1], [0], [0], [1], [0, 0, 1, 1], [], []>} : vector<32x128xf32>, vector<128x128xf32>, vector<32x128xf32> -> vector<32x128xf32>
    %cst_30 = arith.constant 0.000000e+00 : f32
    %43 = vector.broadcast %cst_30 : f32 to vector<32x128xf32>
    %44 = arith.cmpf ogt, %42, %43 : vector<32x128xf32>
    %cst_31 = arith.constant 0.00999999977 : f32
    %45 = vector.broadcast %cst_31 : f32 to vector<32x128xf32>
    %46 = arith.mulf %45, %42 : vector<32x128xf32>
    %47 = arith.select %44, %42, %46 : vector<32x128xi1>, vector<32x128xf32>
    %c0_32 = arith.constant 0 : index
    %c0_33 = arith.constant 0 : index
    %48 = vector.load %arg11[%c0_32, %c0_33] : memref<32x128xf32, #tpu.memory_space<vmem>>, vector<32x128xf32>
    tpu.vector_store %arg11[%c0_32, %c0_33], %47 {strides = array<i32>} : memref<32x128xf32, #tpu.memory_space<vmem>>, vector<32x128xf32>,
    return
  }
  func.func @transform_0(%arg0: i32) -> (i32, i32) {
    %c0_i32 = arith.constant 0 : i32
    %c0_i32_0 = arith.constant 0 : i32
    return %arg0, %c0_i32 : i32, i32
  }
  func.func @transform_1(%arg0: i32) -> (i32, i32) {
    %c0_i32 = arith.constant 0 : i32
    %c0_i32_0 = arith.constant 0 : i32
    return %arg0, %c0_i32 : i32, i32
  }
  func.func @transform_2(%arg0: i32) -> (i32, i32) {
    %c0_i32 = arith.constant 0 : i32
    %c0_i32_0 = arith.constant 0 : i32
    return %arg0, %c0_i32 : i32, i32
  }
  func.func @transform_3(%arg0: i32) -> (i32, i32) {
    %c0_i32 = arith.constant 0 : i32
    %c0_i32_0 = arith.constant 0 : i32
    %c0_i32_1 = arith.constant 0 : i32
    return %c0_i32, %c0_i32_0 : i32, i32
  }
  func.func @transform_4(%arg0: i32) -> (i32, i32) {
    %c0_i32 = arith.constant 0 : i32
    %c0_i32_0 = arith.constant 0 : i32
    %c0_i32_1 = arith.constant 0 : i32
    return %c0_i32, %c0_i32_0 : i32, i32
  }
  func.func @transform_5(%arg0: i32) -> (i32, i32) {
    %c0_i32 = arith.constant 0 : i32
    %c0_i32_0 = arith.constant 0 : i32
    %c0_i32_1 = arith.constant 0 : i32
    return %c0_i32, %c0_i32_0 : i32, i32
  }
  func.func @transform_6(%arg0: i32) -> (i32, i32) {
    %c0_i32 = arith.constant 0 : i32
    %c0_i32_0 = arith.constant 0 : i32
    %c0_i32_1 = arith.constant 0 : i32
    return %c0_i32, %c0_i32_0 : i32, i32
  }
  func.func @transform_7(%arg0: i32) -> (i32, i32) {
    %c0_i32 = arith.constant 0 : i32
    %c0_i32_0 = arith.constant 0 : i32
    %c0_i32_1 = arith.constant 0 : i32
    return %c0_i32, %c0_i32_0 : i32, i32
  }
  func.func @transform_8(%arg0: i32) -> (i32, i32) {
    %c0_i32 = arith.constant 0 : i32
    %c0_i32_0 = arith.constant 0 : i32
    %c0_i32_1 = arith.constant 0 : i32
    return %c0_i32, %c0_i32_0 : i32, i32
  }
  func.func @transform_9(%arg0: i32) -> (i32, i32) {
    %c0_i32 = arith.constant 0 : i32
    %c0_i32_0 = arith.constant 0 : i32
    %c0_i32_1 = arith.constant 0 : i32
    return %c0_i32, %c0_i32_0 : i32, i32
  }
  func.func @transform_10(%arg0: i32) -> (i32, i32) {
    %c0_i32 = arith.constant 0 : i32
    %c0_i32_0 = arith.constant 0 : i32
    return %arg0, %c0_i32 : i32, i32
  }
}

</mosaic_0001>

<llo_original>
// kernel: tpu_custom_call.1
$region0: #{tpu_custom_call.1}
  #allocation0 [shape = 'u32[]', space=smem, size = 0x4, offset = 0x4, fixed_abs, tag = 'smem constant byte address 0x4 - core index']
  #allocation1 [shape = 'u32[72,128]{1,0:T(1,128)}', space=vmem, size = 0x9000, scoped, tag = 'internal scratch']
  %s0 = inlined_call_operand.vmem [shape: f32[32,16], index: 0, kind: input, shape index: {}]
  %s1 = inlined_call_operand.vmem [shape: f32[32,32], index: 1, kind: input, shape index: {}]
  %s2 = inlined_call_operand.hbm [shape: f32[32,32], index: 2, kind: input, shape index: {}]
  %s3 = inlined_call_operand.vmem [shape: f32[16,128], index: 3, kind: input, shape index: {}]
  %s4 = inlined_call_operand.hbm [shape: f32[32,128], index: 4, kind: input, shape index: {}]
  %s5 = inlined_call_operand.hbm [shape: f32[32,128], index: 5, kind: input, shape index: {}]
  %s6 = inlined_call_operand.vmem [shape: f32[1,128], index: 6, kind: input, shape index: {}]
  %s7 = inlined_call_operand.hbm [shape: f32[128,128], index: 7, kind: input, shape index: {}]
  %s8 = inlined_call_operand.hbm [shape: f32[128,128], index: 8, kind: input, shape index: {}]
  %s9 = inlined_call_operand.hbm [shape: f32[128,128], index: 9, kind: input, shape index: {}]
  %s10 = inlined_call_operand.hbm [shape: f32[32,128], index: 10, kind: output, shape index: {}]
  %s11 = sld [smem:[#allocation0]]
  $region74: #{tpu_custom_call.1} parent=0
    _
  %s13 = ssub.s32 1, %s11
  %s14 = scalar_select 0, %s13, %s11
  $region1: #{tpu_custom_call.1} parent=0
    #allocation2 [shape = 'u8[16384]{0}', space=vmem, size = 0x4000, scoped, tag = 'input window, operand 2, single buffered']
    #allocation3 [shape = 's32[1]{0}', space=sflag, size = 0x4, scoped, tag = 'scoped memory for tpu_custom_call.1']
    #allocation4 [shape = 's32[1]{0}', space=sflag, size = 0x4, scoped, tag = 'scoped memory for tpu_custom_call.1']
    #allocation5 [shape = 'u8[16384]{0}', space=vmem, size = 0x4000, scoped, tag = 'input window, operand 4, single buffered']
    #allocation6 [shape = 's32[1]{0}', space=sflag, size = 0x4, scoped, tag = 'scoped memory for tpu_custom_call.1']
    #allocation7 [shape = 'u8[16384]{0}', space=vmem, size = 0x4000, scoped, tag = 'input window, operand 5, single buffered']
    #allocation8 [shape = 'u8[65536]{0}', space=vmem, size = 0x10000, scoped, tag = 'input window, operand 7, single buffered']
    #allocation9 [shape = 's32[1]{0}', space=sflag, size = 0x4, scoped, tag = 'scoped memory for tpu_custom_call.1']
    #allocation10 [shape = 'u8[65536]{0}', space=vmem, size = 0x10000, scoped, tag = 'input window, operand 8, single buffered']
    #allocation11 [shape = 'u8[65536]{0}', space=vmem, size = 0x10000, scoped, tag = 'input window, operand 9, single buffered']
    #allocation12 [shape = 's32[1]{0}', space=sflag, size = 0x4, scoped, tag = 'scoped memory for tpu_custom_call.1']
    #allocation13 [shape = 'u8[16384]{0}', space=vmem, size = 0x4000, scoped, tag = 'output window, operand 0, single buffered']
    %15 = vsyncpa [#allocation3], 0
    %16 = vsyncpa [#allocation6], 0
    %17 = vsyncpa [#allocation9], 0
    %18 = vsyncpa [#allocation12], 0
    %19 = vsyncpa [#allocation4], 0
    // Predicated region
    $region2: #{tpu_custom_call.1} parent=1 // pred_check
      _
    $region3: #{tpu_custom_call.1} parent=1 // pred_check_branch
      %21 = sbr.rel (0) target = $region5
    $region4: #{tpu_custom_call.1} parent=1 // pred_region
      _
    $region5: #{tpu_custom_call.1} parent=1 // pred_fallthru
      _
    // Predicated region
    $region6: #{tpu_custom_call.1} parent=1 // pred_check
      _
    $region7: #{tpu_custom_call.1} parent=1 // pred_check_branch
      %23 = sbr.rel (0) target = $region9
    $region8: #{tpu_custom_call.1} parent=1 // pred_region
      _
    $region9: #{tpu_custom_call.1} parent=1 // pred_fallthru
      _
    // Predicated region
    $region10: #{tpu_custom_call.1} parent=1 // pred_check
      _
    $region11: #{tpu_custom_call.1} parent=1 // pred_check_branch
      %25 = sbr.rel (0) target = $region13
    $region12: #{tpu_custom_call.1} parent=1 // pred_region
      %27 = vsyncadd [#allocation3], 0
      %s28 = sshll.u32 %s2, 4
      %s29 = int_to_ptr.hbm [resolvable:$true] %s28
      %s30 = sshll.u32 [#allocation2], 4
      %s31 = int_to_ptr.vmem [resolvable:$true] %s30
      %36 = dma.hbm_to_vmem [thread:$0]  %s29, 512, %s31, [#allocation3], 128, 128, 8
    $region13: #{tpu_custom_call.1} parent=1 // pred_fallthru
      _
    // Predicated region
    $region14: #{tpu_custom_call.1} parent=1 // pred_check
      _
    $region15: #{tpu_custom_call.1} parent=1 // pred_check_branch
      %38 = sbr.rel (0) target = $region17
    $region16: #{tpu_custom_call.1} parent=1 // pred_region
      _
    $region17: #{tpu_custom_call.1} parent=1 // pred_fallthru
      _
    // Predicated region
    $region18: #{tpu_custom_call.1} parent=1 // pred_check
      _
    $region19: #{tpu_custom_call.1} parent=1 // pred_check_branch
      %40 = sbr.rel (0) target = $region21
    $region20: #{tpu_custom_call.1} parent=1 // pred_region
      %42 = vsyncadd [#allocation6], 0
      %s43 = sshll.u32 %s4, 4
      %s44 = int_to_ptr.hbm [resolvable:$true] %s43
      %s45 = sshll.u32 [#allocation5], 4
      %s46 = int_to_ptr.vmem [resolvable:$true] %s45
      %51 = dma.hbm_to_vmem [thread:$0]  %s44, 512, %s46, [#allocation6], 128, 128, 8
    $region21: #{tpu_custom_call.1} parent=1 // pred_fallthru
      _
    // Predicated region
    $region22: #{tpu_custom_call.1} parent=1 // pred_check
      _
    $region23: #{tpu_custom_call.1} parent=1 // pred_check_branch
      %53 = sbr.rel (0) target = $region25
    $region24: #{tpu_custom_call.1} parent=1 // pred_region
      %55 = vsyncadd [#allocation6], 0
      %s56 = sshll.u32 %s5, 4
      %s57 = int_to_ptr.hbm [resolvable:$true] %s56
      %s58 = sshll.u32 [#allocation7], 4
      %s59 = int_to_ptr.vmem [resolvable:$true] %s58
      %64 = dma.hbm_to_vmem [thread:$0]  %s57, 512, %s59, [#allocation6], 128, 128, 8
    $region25: #{tpu_custom_call.1} parent=1 // pred_fallthru
      _
    // Predicated region
    $region26: #{tpu_custom_call.1} parent=1 // pred_check
      _
    $region27: #{tpu_custom_call.1} parent=1 // pred_check_branch
      %66 = sbr.rel (0) target = $region29
    $region28: #{tpu_custom_call.1} parent=1 // pred_region
      _
    $region29: #{tpu_custom_call.1} parent=1 // pred_fallthru
      _
    // Predicated region
    $region30: #{tpu_custom_call.1} parent=1 // pred_check
      _
    $region31: #{tpu_custom_call.1} parent=1 // pred_check_branch
      %68 = sbr.rel (0) target = $region33
    $region32: #{tpu_custom_call.1} parent=1 // pred_region
      %70 = vsyncadd [#allocation9], 0
      %s71 = sshll.u32 %s7, 4
      %s72 = int_to_ptr.hbm [resolvable:$true] %s71
      %s73 = sshll.u32 [#allocation8], 4
      %s74 = int_to_ptr.vmem [resolvable:$true] %s73
      %79 = dma.hbm_to_vmem [thread:$0]  %s72, 2048, %s74, [#allocation9], 128, 128, 8
    $region33: #{tpu_custom_call.1} parent=1 // pred_fallthru
      _
    // Predicated region
    $region34: #{tpu_custom_call.1} parent=1 // pred_check
      _
    $region35: #{tpu_custom_call.1} parent=1 // pred_check_branch
      %81 = sbr.rel (0) target = $region37
    $region36: #{tpu_custom_call.1} parent=1 // pred_region
      %83 = vsyncadd [#allocation9], 0
      %s84 = sshll.u32 %s8, 4
      %s85 = int_to_ptr.hbm [resolvable:$true] %s84
      %s86 = sshll.u32 [#allocation10], 4
      %s87 = int_to_ptr.vmem [resolvable:$true] %s86
      %92 = dma.hbm_to_vmem [thread:$0]  %s85, 2048, %s87, [#allocation9], 128, 128, 8
    $region37: #{tpu_custom_call.1} parent=1 // pred_fallthru
      _
    // Predicated region
    $region38: #{tpu_custom_call.1} parent=1 // pred_check
      _
    $region39: #{tpu_custom_call.1} parent=1 // pred_check_branch
      %94 = sbr.rel (0) target = $region41
    $region40: #{tpu_custom_call.1} parent=1 // pred_region
      %96 = vsyncadd [#allocation12], 0
      %s97 = sshll.u32 %s9, 4
      %s98 = int_to_ptr.hbm [resolvable:$true] %s97
      %s99 = sshll.u32 [#allocation11], 4
      %s100 = int_to_ptr.vmem [resolvable:$true] %s99
      %105 = dma.hbm_to_vmem [thread:$0]  %s98, 2048, %s100, [#allocation12], 128, 128, 8
    $region41: #{tpu_custom_call.1} parent=1 // pred_fallthru
      _
    // Predicated region
    $region42: #{tpu_custom_call.1} parent=1 // pred_check
      _
    $region43: #{tpu_custom_call.1} parent=1 // pred_check_branch
      %107 = sbr.rel (0) target = $region45
    $region44: #{tpu_custom_call.1} parent=1 // pred_region
      %109 = dma.done [#allocation3], 512
    $region45: #{tpu_custom_call.1} parent=1 // pred_fallthru
      _
    // Predicated region
    $region46: #{tpu_custom_call.1} parent=1 // pred_check
      _
    $region47: #{tpu_custom_call.1} parent=1 // pred_check_branch
      %111 = sbr.rel (0) target = $region49
    $region48: #{tpu_custom_call.1} parent=1 // pred_region
      %113 = dma.done [#allocation6], 512
    $region49: #{tpu_custom_call.1} parent=1 // pred_fallthru
      _
    // Predicated region
    $region50: #{tpu_custom_call.1} parent=1 // pred_check
      _
    $region51: #{tpu_custom_call.1} parent=1 // pred_check_branch
      %115 = sbr.rel (0) target = $region53
    $region52: #{tpu_custom_call.1} parent=1 // pred_region
      %117 = dma.done [#allocation6], 512
    $region53: #{tpu_custom_call.1} parent=1 // pred_fallthru
      _
    // Predicated region
    $region54: #{tpu_custom_call.1} parent=1 // pred_check
      _
    $region55: #{tpu_custom_call.1} parent=1 // pred_check_branch
      %119 = sbr.rel (0) target = $region57
    $region56: #{tpu_custom_call.1} parent=1 // pred_region
      %121 = dma.done [#allocation9], 2048
    $region57: #{tpu_custom_call.1} parent=1 // pred_fallthru
      _
    // Predicated region
    $region58: #{tpu_custom_call.1} parent=1 // pred_check
      _
    $region59: #{tpu_custom_call.1} parent=1 // pred_check_branch
      %123 = sbr.rel (0) target = $region61
    $region60: #{tpu_custom_call.1} parent=1 // pred_region
      %125 = dma.done [#allocation9], 2048
    $region61: #{tpu_custom_call.1} parent=1 // pred_fallthru
      _
    // Predicated region
    $region62: #{tpu_custom_call.1} parent=1 // pred_check
      _
    $region63: #{tpu_custom_call.1} parent=1 // pred_check_branch
      %127 = sbr.rel (0) target = $region65
    $region64: #{tpu_custom_call.1} parent=1 // pred_region
      %129 = dma.done [#allocation12], 2048
    $region65: #{tpu_custom_call.1} parent=1 // pred_fallthru
      _
    %v130 = vld [vmem:[%s0] sm:$0xff]
    %v131 = vld [vmem:[%s0 + $0x8] sm:$0xff]
    %v132 = vld [vmem:[%s0 + $0x10] sm:$0xff]
    %v133 = vld [vmem:[%s0 + $0x18] sm:$0xff]
    %v134 = vld [vmem:[%s3] sm:$0xff]
    %v135 = vld [vmem:[%s3 + $0x8] sm:$0xff]
    %v136 = vld [vmem:[%s1] sm:$0xff]
    %v137 = vld [vmem:[%s1 + $0x8] sm:$0xff]
    %v138 = vld [vmem:[%s1 + $0x10] sm:$0xff]
    %v139 = vld [vmem:[%s1 + $0x18] sm:$0xff]
    %v140 = vld [vmem:[#allocation5] sm:$0xff]
    %v141 = vld [vmem:[#allocation5 + $0x8] sm:$0xff]
    %v142 = vld [vmem:[#allocation5 + $0x10] sm:$0xff]
    %v143 = vld [vmem:[#allocation5 + $0x18] sm:$0xff]
    %vm144 = vcmask 261120
    %v146 = vsel %vm144, %v136, 0
    %v149 = vsel %vm144, %v137, 0
    %v152 = vsel %vm144, %v138, 0
    %v155 = vsel %vm144, %v139, 0
    %157 = vmatpush.msra.mxu0 0.0
    %158 = vmatpush.msra.mxu0 0.0
    %159 = vmatpush.msra.mxu0 0.0
    %160 = vmatpush.msra.mxu0 0.0
    %161 = vmatpush.msra.mxu0 0.0
    %162 = vmatpush.msra.mxu0 0.0
    %163 = vmatpush.msra.mxu0 0.0
    %164 = vmatpush.msra.mxu0 0.0
    %165 = vmatpush.msra.mxu0 0.0
    %166 = vmatpush.msra.mxu0 0.0
    %167 = vmatpush.msra.mxu0 0.0
    %168 = vmatpush.msra.mxu0 0.0
    %169 = vmatpush.msra.mxu0 %v143
    %170 = vmatpush.msra.mxu0 %v142
    %171 = vmatpush.msra.mxu0 %v141
    %172 = vmatpush.msra.mxu0 %v140
    %173 = vmatmul.f32.gmra.mxu0 %v146
    %v174 = vpop.f32.mrf.mxu0
    %v175 = vadd.f32 0.0, %v174
    %176 = vmatmul.f32.gmra.mxu0 %v149
    %v177 = vpop.f32.mrf.mxu0
    %v178 = vadd.f32 0.0, %v177
    %179 = vmatmul.f32.gmra.mxu0 %v152
    %v180 = vpop.f32.mrf.mxu0
    %v181 = vadd.f32 0.0, %v180
    %182 = vmatmul.f32.gmra.mxu0 %v155
    %v183 = vpop.f32.mrf.mxu0
    %v184 = vadd.f32 0.0, %v183
    %185 = vdwg.mxu0
    %vm186 = vcmask 130048
    %v188 = vsel %vm186, %v130, 0
    %v191 = vsel %vm186, %v131, 0
    %v194 = vsel %vm186, %v132, 0
    %v197 = vsel %vm186, %v133, 0
    %199 = vmatpush.msra.mxu0 0.0
    %200 = vmatpush.msra.mxu0 0.0
    %201 = vmatpush.msra.mxu0 0.0
    %202 = vmatpush.msra.mxu0 0.0
    %203 = vmatpush.msra.mxu0 0.0
    %204 = vmatpush.msra.mxu0 0.0
    %205 = vmatpush.msra.mxu0 0.0
    %206 = vmatpush.msra.mxu0 0.0
    %207 = vmatpush.msra.mxu0 0.0
    %208 = vmatpush.msra.mxu0 0.0
    %209 = vmatpush.msra.mxu0 0.0
    %210 = vmatpush.msra.mxu0 0.0
    %211 = vmatpush.msra.mxu0 0.0
    %212 = vmatpush.msra.mxu0 0.0
    %213 = vmatpush.msra.mxu0 %v135
    %214 = vmatpush.msra.mxu0 %v134
    %215 = vmatmul.f32.gmra.mxu0 %v188
    %v216 = vpop.f32.mrf.mxu0
    %v217 = vadd.f32 %v175, %v216
    %218 = vmatmul.f32.gmra.mxu0 %v191
    %v219 = vpop.f32.mrf.mxu0
    %v220 = vadd.f32 %v178, %v219
    %221 = vmatmul.f32.gmra.mxu0 %v194
    %v222 = vpop.f32.mrf.mxu0
    %v223 = vadd.f32 %v181, %v222
    %224 = vmatmul.f32.gmra.mxu0 %v197
    %v225 = vpop.f32.mrf.mxu0
    %v226 = vadd.f32 %v184, %v225
    %227 = vdwg.mxu0
    %v228 = vld [vmem:[#allocation2] sm:$0xff]
    %v229 = vld [vmem:[#allocation2 + $0x8] sm:$0xff]
    %v230 = vld [vmem:[#allocation2 + $0x10] sm:$0xff]
    %v231 = vld [vmem:[#allocation2 + $0x18] sm:$0xff]
    %v232 = vld [vmem:[#allocation7] sm:$0xff]
    %v233 = vld [vmem:[#allocation7 + $0x8] sm:$0xff]
    %v234 = vld [vmem:[#allocation7 + $0x10] sm:$0xff]
    %v235 = vld [vmem:[#allocation7 + $0x18] sm:$0xff]
    %v237 = vsel %vm144, %v228, 0
    %v240 = vsel %vm144, %v229, 0
    %v243 = vsel %vm144, %v230, 0
    %v246 = vsel %vm144, %v231, 0
    %248 = vmatpush.msra.mxu0 0.0
    %249 = vmatpush.msra.mxu0 0.0
    %250 = vmatpush.msra.mxu0 0.0
    %251 = vmatpush.msra.mxu0 0.0
    %252 = vmatpush.msra.mxu0 0.0
    %253 = vmatpush.msra.mxu0 0.0
    %254 = vmatpush.msra.mxu0 0.0
    %255 = vmatpush.msra.mxu0 0.0
    %256 = vmatpush.msra.mxu0 0.0
    %257 = vmatpush.msra.mxu0 0.0
    %258 = vmatpush.msra.mxu0 0.0
    %259 = vmatpush.msra.mxu0 0.0
    %260 = vmatpush.msra.mxu0 %v235
    %261 = vmatpush.msra.mxu0 %v234
    %262 = vmatpush.msra.mxu0 %v233
    %263 = vmatpush.msra.mxu0 %v232
    %264 = vmatmul.f32.gmra.mxu0 %v237
    %v265 = vpop.f32.mrf.mxu0
    %v266 = vadd.f32 0.0, %v265
    %267 = vmatmul.f32.gmra.mxu0 %v240
    %v268 = vpop.f32.mrf.mxu0
    %v269 = vadd.f32 0.0, %v268
    %270 = vmatmul.f32.gmra.mxu0 %v243
    %v271 = vpop.f32.mrf.mxu0
    %v272 = vadd.f32 0.0, %v271
    %273 = vmatmul.f32.gmra.mxu0 %v246
    %v274 = vpop.f32.mrf.mxu0
    %v275 = vadd.f32 0.0, %v274
    %276 = vdwg.mxu0
    %v277 = vadd.f32 %v217, %v266
    %v278 = vadd.f32 %v220, %v269
    %v279 = vadd.f32 %v223, %v272
    %v280 = vadd.f32 %v226, %v275
    %v281 = vld [vmem:[%s6] sm:$0x1]
    %v283 = vperm.slane %v281, 0
    %v285 = vadd.f32 %v277, %v283
    %v286 = vadd.f32 %v278, %v283
    %v287 = vadd.f32 %v279, %v283
    %v288 = vadd.f32 %v280, %v283
    %vm289 = vcmp.gt.f32.partialorder %v285, 0.0
    %vm290 = vcmp.gt.f32.partialorder %v286, 0.0
    %vm291 = vcmp.gt.f32.partialorder %v287, 0.0
    %vm292 = vcmp.gt.f32.partialorder %v288, 0.0
    %v293 = vmul.f32 %v285, 0.01
    %v294 = vmul.f32 %v286, 0.01
    %v295 = vmul.f32 %v287, 0.01
    %v296 = vmul.f32 %v288, 0.01
    %v297 = vsel %vm289, %v285, %v293
    %v298 = vsel %vm290, %v286, %v294
    %v299 = vsel %vm291, %v287, %v295
    %v300 = vsel %vm292, %v288, %v296
    %v301 = vld [vmem:[#allocation8] sm:$0xff]
    %v302 = vld [vmem:[#allocation8 + $0x8] sm:$0xff]
    %v303 = vld [vmem:[#allocation8 + $0x10] sm:$0xff]
    %v304 = vld [vmem:[#allocation8 + $0x18] sm:$0xff]
    %v305 = vld [vmem:[#allocation8 + $0x20] sm:$0xff]
    %v306 = vld [vmem:[#allocation8 + $0x28] sm:$0xff]
    %v307 = vld [vmem:[#allocation8 + $0x30] sm:$0xff]
    %v308 = vld [vmem:[#allocation8 + $0x38] sm:$0xff]
    %v309 = vld [vmem:[#allocation8 + $0x40] sm:$0xff]
    %v310 = vld [vmem:[#allocation8 + $0x48] sm:$0xff]
    %v311 = vld [vmem:[#allocation8 + $0x50] sm:$0xff]
    %v312 = vld [vmem:[#allocation8 + $0x58] sm:$0xff]
    %v313 = vld [vmem:[#allocation8 + $0x60] sm:$0xff]
    %v314 = vld [vmem:[#allocation8 + $0x68] sm:$0xff]
    %v315 = vld [vmem:[#allocation8 + $0x70] sm:$0xff]
    %v316 = vld [vmem:[#allocation8 + $0x78] sm:$0xff]
    %317 = vmatpush.msra.mxu0 %v316
    %318 = vmatpush.msra.mxu0 %v315
    %319 = vmatpush.msra.mxu0 %v314
    %320 = vmatpush.msra.mxu0 %v313
    %321 = vmatpush.msra.mxu0 %v312
    %322 = vmatpush.msra.mxu0 %v311
    %323 = vmatpush.msra.mxu0 %v310
    %324 = vmatpush.msra.mxu0 %v309
    %325 = vmatpush.msra.mxu0 %v308
    %326 = vmatpush.msra.mxu0 %v307
    %327 = vmatpush.msra.mxu0 %v306
    %328 = vmatpush.msra.mxu0 %v305
    %329 = vmatpush.msra.mxu0 %v304
    %330 = vmatpush.msra.mxu0 %v303
    %331 = vmatpush.msra.mxu0 %v302
    %332 = vmatpush.msra.mxu0 %v301
    %333 = vmatmul.f32.gmra.mxu0 %v297
    %v334 = vpop.f32.mrf.mxu0
    %v335 = vadd.f32 0.0, %v334
    %336 = vmatmul.f32.gmra.mxu0 %v298
    %v337 = vpop.f32.mrf.mxu0
    %v338 = vadd.f32 0.0, %v337
    %339 = vmatmul.f32.gmra.mxu0 %v299
    %v340 = vpop.f32.mrf.mxu0
    %v341 = vadd.f32 0.0, %v340
    %342 = vmatmul.f32.gmra.mxu0 %v300
    %v343 = vpop.f32.mrf.mxu0
    %v344 = vadd.f32 0.0, %v343
    %345 = vdwg.mxu0
    %vm346 = vcmp.gt.f32.partialorder %v335, 0.0
    %vm347 = vcmp.gt.f32.partialorder %v338, 0.0
    %vm348 = vcmp.gt.f32.partialorder %v341, 0.0
    %vm349 = vcmp.gt.f32.partialorder %v344, 0.0
    %v350 = vmul.f32 %v335, 0.01
    %v351 = vmul.f32 %v338, 0.01
    %v352 = vmul.f32 %v341, 0.01
    %v353 = vmul.f32 %v344, 0.01
    %v354 = vsel %vm346, %v335, %v350
    %v355 = vsel %vm347, %v338, %v351
    %v356 = vsel %vm348, %v341, %v352
    %v357 = vsel %vm349, %v344, %v353
    %v358 = vld [vmem:[#allocation10] sm:$0xff]
    %v359 = vld [vmem:[#allocation10 + $0x8] sm:$0xff]
    %v360 = vld [vmem:[#allocation10 + $0x10] sm:$0xff]
    %v361 = vld [vmem:[#allocation10 + $0x18] sm:$0xff]
    %v362 = vld [vmem:[#allocation10 + $0x20] sm:$0xff]
    %v363 = vld [vmem:[#allocation10 + $0x28] sm:$0xff]
    %v364 = vld [vmem:[#allocation10 + $0x30] sm:$0xff]
    %v365 = vld [vmem:[#allocation10 + $0x38] sm:$0xff]
    %v366 = vld [vmem:[#allocation10 + $0x40] sm:$0xff]
    %v367 = vld [vmem:[#allocation10 + $0x48] sm:$0xff]
    %v368 = vld [vmem:[#allocation10 + $0x50] sm:$0xff]
    %v369 = vld [vmem:[#allocation10 + $0x58] sm:$0xff]
    %v370 = vld [vmem:[#allocation10 + $0x60] sm:$0xff]
    %v371 = vld [vmem:[#allocation10 + $0x68] sm:$0xff]
    %v372 = vld [vmem:[#allocation10 + $0x70] sm:$0xff]
    %v373 = vld [vmem:[#allocation10 + $0x78] sm:$0xff]
    %374 = vmatpush.msra.mxu0 %v373
    %375 = vmatpush.msra.mxu0 %v372
    %376 = vmatpush.msra.mxu0 %v371
    %377 = vmatpush.msra.mxu0 %v370
    %378 = vmatpush.msra.mxu0 %v369
    %379 = vmatpush.msra.mxu0 %v368
    %380 = vmatpush.msra.mxu0 %v367
    %381 = vmatpush.msra.mxu0 %v366
    %382 = vmatpush.msra.mxu0 %v365
    %383 = vmatpush.msra.mxu0 %v364
    %384 = vmatpush.msra.mxu0 %v363
    %385 = vmatpush.msra.mxu0 %v362
    %386 = vmatpush.msra.mxu0 %v361
    %387 = vmatpush.msra.mxu0 %v360
    %388 = vmatpush.msra.mxu0 %v359
    %389 = vmatpush.msra.mxu0 %v358
    %390 = vmatmul.f32.gmra.mxu0 %v297
    %v391 = vpop.f32.mrf.mxu0
    %v392 = vadd.f32 0.0, %v391
    %393 = vmatmul.f32.gmra.mxu0 %v298
    %v394 = vpop.f32.mrf.mxu0
    %v395 = vadd.f32 0.0, %v394
    %396 = vmatmul.f32.gmra.mxu0 %v299
    %v397 = vpop.f32.mrf.mxu0
    %v398 = vadd.f32 0.0, %v397
    %399 = vmatmul.f32.gmra.mxu0 %v300
    %v400 = vpop.f32.mrf.mxu0
    %v401 = vadd.f32 0.0, %v400
    %402 = vdwg.mxu0
    %v403 = vlaneseq
    %v404 = vand.u32 %v403, 127
    %vm405 = vcmp.ge.s32.totalorder %v404, 32
    %vm406 = vcmp.lt.s32.totalorder %v404, 64
    %vm407 = vmand %vm405, %vm406
    %v408 = vadd.f32 %v354, %v392
    %v409 = vadd.f32 %v355, %v395
    %v410 = vadd.f32 %v356, %v398
    %v411 = vadd.f32 %v357, %v401
    %vm412 = vcmp.gt.f32.partialorder %v408, 0.0
    %vm413 = vcmp.gt.f32.partialorder %v409, 0.0
    %vm414 = vcmp.gt.f32.partialorder %v410, 0.0
    %vm415 = vcmp.gt.f32.partialorder %v411, 0.0
    %v416 = vmul.f32 %v408, 0.01
    %v417 = vmul.f32 %v409, 0.01
    %v418 = vmul.f32 %v410, 0.01
    %v419 = vmul.f32 %v411, 0.01
    %v420 = vsel %vm412, %v408, %v416
    %v421 = vsel %vm413, %v409, %v417
    %v422 = vsel %vm414, %v410, %v418
    %v423 = vsel %vm415, %v411, %v419
    %v424 = vsel %vm407, %v420, %v354
    %v425 = vsel %vm407, %v421, %v355
    %v426 = vsel %vm407, %v422, %v356
    %v427 = vsel %vm407, %v423, %v357
    %v428 = vld [vmem:[#allocation11] sm:$0xff]
    %v429 = vld [vmem:[#allocation11 + $0x8] sm:$0xff]
    %v430 = vld [vmem:[#allocation11 + $0x10] sm:$0xff]
    %v431 = vld [vmem:[#allocation11 + $0x18] sm:$0xff]
    %v432 = vld [vmem:[#allocation11 + $0x20] sm:$0xff]
    %v433 = vld [vmem:[#allocation11 + $0x28] sm:$0xff]
    %v434 = vld [vmem:[#allocation11 + $0x30] sm:$0xff]
    %v435 = vld [vmem:[#allocation11 + $0x38] sm:$0xff]
    %v436 = vld [vmem:[#allocation11 + $0x40] sm:$0xff]
    %v437 = vld [vmem:[#allocation11 + $0x48] sm:$0xff]
    %v438 = vld [vmem:[#allocation11 + $0x50] sm:$0xff]
    %v439 = vld [vmem:[#allocation11 + $0x58] sm:$0xff]
    %v440 = vld [vmem:[#allocation11 + $0x60] sm:$0xff]
    %v441 = vld [vmem:[#allocation11 + $0x68] sm:$0xff]
    %v442 = vld [vmem:[#allocation11 + $0x70] sm:$0xff]
    %v443 = vld [vmem:[#allocation11 + $0x78] sm:$0xff]
    %444 = vmatpush.msra.mxu0 %v443
    %445 = vmatpush.msra.mxu0 %v442
    %446 = vmatpush.msra.mxu0 %v441
    %447 = vmatpush.msra.mxu0 %v440
    %448 = vmatpush.msra.mxu0 %v439
    %449 = vmatpush.msra.mxu0 %v438
    %450 = vmatpush.msra.mxu0 %v437
    %451 = vmatpush.msra.mxu0 %v436
    %452 = vmatpush.msra.mxu0 %v435
    %453 = vmatpush.msra.mxu0 %v434
    %454 = vmatpush.msra.mxu0 %v433
    %455 = vmatpush.msra.mxu0 %v432
    %456 = vmatpush.msra.mxu0 %v431
    %457 = vmatpush.msra.mxu0 %v430
    %458 = vmatpush.msra.mxu0 %v429
    %459 = vmatpush.msra.mxu0 %v428
    %460 = vmatmul.f32.gmra.mxu0 %v424
    %v461 = vpop.f32.mrf.mxu0
    %v462 = vadd.f32 0.0, %v461
    %463 = vmatmul.f32.gmra.mxu0 %v425
    %v464 = vpop.f32.mrf.mxu0
    %v465 = vadd.f32 0.0, %v464
    %466 = vmatmul.f32.gmra.mxu0 %v426
    %v467 = vpop.f32.mrf.mxu0
    %v468 = vadd.f32 0.0, %v467
    %469 = vmatmul.f32.gmra.mxu0 %v427
    %v470 = vpop.f32.mrf.mxu0
    %v471 = vadd.f32 0.0, %v470
    %472 = vdwg.mxu0
    %vm473 = vcmp.gt.f32.partialorder %v462, 0.0
    %vm474 = vcmp.gt.f32.partialorder %v465, 0.0
    %vm475 = vcmp.gt.f32.partialorder %v468, 0.0
    %vm476 = vcmp.gt.f32.partialorder %v471, 0.0
    %v477 = vmul.f32 %v462, 0.01
    %v478 = vmul.f32 %v465, 0.01
    %v479 = vmul.f32 %v468, 0.01
    %v480 = vmul.f32 %v471, 0.01
    %v481 = vsel %vm473, %v462, %v477
    %v482 = vsel %vm474, %v465, %v478
    %v483 = vsel %vm475, %v468, %v479
    %v484 = vsel %vm476, %v471, %v480
    %485 = vst [vmem:[#allocation13] sm:$0xff] %v481
    %486 = vst [vmem:[#allocation13 + $0x8] sm:$0xff] %v482
    %487 = vst [vmem:[#allocation13 + $0x10] sm:$0xff] %v483
    %488 = vst [vmem:[#allocation13 + $0x18] sm:$0xff] %v484
    // Predicated region
    $region66: #{tpu_custom_call.1} parent=1 // pred_check
      _
    $region67: #{tpu_custom_call.1} parent=1 // pred_check_branch
      %490 = sbr.rel (0) target = $region69
    $region68: #{tpu_custom_call.1} parent=1 // pred_region
      %492 = vsyncadd [#allocation4], 0
      %s493 = sshll.u32 [#allocation13], 4
      %s494 = int_to_ptr.vmem [resolvable:$true] %s493
      %s495 = sshll.u32 %s10, 4
      %s496 = int_to_ptr.hbm [resolvable:$true] %s495
      %501 = dma.vmem_to_hbm [thread:$0]  %s494, 512, %s496, [#allocation4], 128, 128, 8
    $region69: #{tpu_custom_call.1} parent=1 // pred_fallthru
      _
    // Predicated region
    $region70: #{tpu_custom_call.1} parent=1 // pred_check
      _
    $region71: #{tpu_custom_call.1} parent=1 // pred_check_branch
      %503 = sbr.rel (0) target = $region73
    $region72: #{tpu_custom_call.1} parent=1 // pred_region
      %505 = dma.done [#allocation4], 512
    $region73: #{tpu_custom_call.1} parent=1 // pred_fallthru
      _
    %506 = vsyncpa [#allocation3], 1
    %507 = vsyncpa [#allocation6], 1
    %508 = vsyncpa [#allocation9], 1
    %509 = vsyncpa [#allocation12], 1
    %510 = vsyncpa [#allocation4], 1

</llo_original>
